<compile_context>
chip_gen: v7x
topology: tpu7x:2x2x1
jax: 0.10.0
libtpu: 0.0.40
codegen_flags: <defaults>
</compile_context>

<pallas_src>
import jax
import jax.numpy as jnp
from jax import lax
from jax.experimental import pallas as pl
from jax.experimental.pallas import tpu as pltpu


def _round_up(a, m):
    return (a + m - 1) // m * m


def _sublane_multiple(dtype):
    # 8 sublanes for 32-bit, 16 for 16-bit, 32 for 8-bit dtypes.
    return max(8, 32 // jnp.dtype(dtype).itemsize)


def _vmem_capacity_bytes():
    """Physical VMEM per TensorCore, generation-aware; conservative fallback."""
    try:
        info = pltpu.get_tpu_info()
        cap = getattr(info, "vmem_capacity_bytes", None)
        if cap:
            return int(cap)
    except Exception:
        pass
    return 64 * 1024 * 1024  # v7x per-TC VMEM (smallest current generation)


def _vmem_estimate(tn, C, O_pad, x_itemsize, out_itemsize):
    est = (2 * tn * C * x_itemsize          # x tiles (double-buffered)
           + 2 * tn * O_pad * out_itemsize  # out tiles (double-buffered)
           + C * O_pad * 2                  # bf16 weight (single-buffered)
           + 2 * C * 4 + O_pad * 4          # modulation rows + bias
           # in-kernel temporaries: f32 x / xn, bf16 y, f32 accumulator
           + tn * C * (4 + 4 + 2) + tn * O_pad * 4)
    return int(est * 1.25)                  # headroom for Mosaic staging


def final_layer_kernel(x_ref, mod_ref, w_ref, b_ref, o_ref):
    # x_ref:   (TN, C)      token tile of one batch element (input dtype)
    # mod_ref: (2, C)       row 0 = shift, row 1 = 1 + scale (f32, per batch)
    # w_ref:   (C, O_pad)   linear weight, pre-transposed to MXU layout, bf16
    # b_ref:   (1, O_pad)   linear bias, f32, zero-padded
    # o_ref:   (TN, O_pad)
    x = x_ref[...].astype(jnp.float32)                    # (TN, C)

    # LayerNorm (no affine, eps=1e-6, biased variance) — single-pass stats.
    mu = jnp.mean(x, axis=-1, keepdims=True)              # (TN, 1)
    ex2 = jnp.mean(x * x, axis=-1, keepdims=True)         # (TN, 1)
    var = jnp.maximum(ex2 - mu * mu, 0.0)                 # guard cancellation
    xn = (x - mu) * lax.rsqrt(var + 1e-6)                 # (TN, C)

    # Modulation: xn * (1 + scale) + shift, broadcast over the token tile.
    shift = mod_ref[0:1, :]                                # (1, C)
    scale1 = mod_ref[1:2, :]                               # (1, C) == 1+scale
    y = (xn * scale1 + shift).astype(jnp.bfloat16)         # bf16 MXU operand

    # Linear projection on the MXU: (TN, C) x (C, O_pad), f32 accumulation.
    out = jnp.dot(y, w_ref[...], preferred_element_type=jnp.float32)
    out = out + b_ref[...]                                 # (1, O_pad) bcast
    o_ref[...] = out.astype(o_ref.dtype)


def final_layer(x, t, scale_shift_table, w, b, *, tn=512, out_dtype=None,
                trim_output=True):
    """x: (B, N, C), t: (B, C), scale_shift_table: (1, 2, C),
    w: (O, C) [PyTorch layout], b: (O,).
    Returns (B, N, O), or padded (B, N, O_pad) when trim_output=False."""
    B, N, C = x.shape
    O = w.shape[0]
    out_dtype = x.dtype if out_dtype is None else jnp.dtype(out_dtype)
    x_itemsize = jnp.dtype(x.dtype).itemsize
    out_itemsize = jnp.dtype(out_dtype).itemsize

    # Lane-dense output: pad output channels to a multiple of 128.
    O_pad = _round_up(max(O, 128), 128)

    # ---- token tile selection --------------------------------------------
    sub = _sublane_multiple(x.dtype)
    tn = max(sub, _round_up(min(tn, _round_up(N, sub)), sub))

    # Keep >= 4 parallel grid steps so both v7x TensorCores stay fed.
    while tn > sub and B * pl.cdiv(N, tn) < 4:
        new_tn = _round_up(max(tn // 2, sub), sub)
        if new_tn == tn:
            break
        tn = new_tn

    # Generation-aware VMEM budget (counts in-kernel f32/bf16 temporaries).
    vmem_cap = int(0.85 * _vmem_capacity_bytes())
    while tn > sub and _vmem_estimate(tn, C, O_pad, x_itemsize,
                                      out_itemsize) > vmem_cap:
        new_tn = _round_up(max(tn // 2, sub), sub)
        if new_tn == tn:
            break
        tn = new_tn
    n_tiles = pl.cdiv(N, tn)

    vmem_limit = int(min(
        max(_vmem_estimate(tn, C, O_pad, x_itemsize, out_itemsize),
            32 * 1024 * 1024),
        vmem_cap))

    # ---- parameter / modulation glue (constant-shaped, JIT-hoisted) -------
    # (scale_shift_table + t.unsqueeze(1)).chunk(2, dim=1); '1 + scale' folded.
    shift = (scale_shift_table[:, 0, :] + t).astype(jnp.float32)        # (B,C)
    scale1 = (1.0 + scale_shift_table[:, 1, :] + t).astype(jnp.float32)  # (B,C)
    mod = jnp.stack([shift, scale1], axis=1)                            # (B,2,C)

    # Weight pre-transposed once to the MXU-native (C, O_pad) bf16 layout.
    w_p = jnp.zeros((C, O_pad), jnp.bfloat16).at[:, :O].set(
        w.T.astype(jnp.bfloat16))
    b_p = jnp.zeros((1, O_pad), jnp.float32).at[0, :O].set(
        b.astype(jnp.float32))

    cost = pl.CostEstimate(
        flops=2 * B * N * C * O_pad,
        transcendentals=0,
        bytes_accessed=(B * N * C * x_itemsize
                        + B * N * O_pad * out_itemsize
                        + C * O_pad * 2 + B * 2 * C * 4 + O_pad * 4))

    def build(single_buffer):
        pm = {"pipeline_mode": pl.Buffered(1)} if single_buffer else {}
        grid_spec = pltpu.PrefetchScalarGridSpec(
            num_scalar_prefetch=0,
            grid=(B, n_tiles),
            in_specs=[
                pl.BlockSpec((pl.Squeezed(), tn, C),
                             lambda bi, ni: (bi, ni, 0)),
                pl.BlockSpec((pl.Squeezed(), 2, C),
                             lambda bi, ni: (bi, 0, 0), **pm),
                pl.BlockSpec((C, O_pad), lambda bi, ni: (0, 0), **pm),
                pl.BlockSpec((1, O_pad), lambda bi, ni: (0, 0), **pm),
            ],
            out_specs=pl.BlockSpec((pl.Squeezed(), tn, O_pad),
                                   lambda bi, ni: (bi, ni, 0)),
        )
        return pl.pallas_call(
            final_layer_kernel,
            out_shape=jax.ShapeDtypeStruct((B, N, O_pad), out_dtype),
            grid_spec=grid_spec,
            compiler_params=pltpu.CompilerParams(
                dimension_semantics=("parallel", "parallel"),
                vmem_limit_bytes=vmem_limit),
            cost_estimate=cost,
        )

    try:
        out = build(single_buffer=True)(x, mod, w_p, b_p)
    except Exception:
        # Fallback for Pallas versions without BlockSpec(pipeline_mode=...):
        # identical kernel with default double-buffering of all inputs.
        out = build(single_buffer=False)(x, mod, w_p, b_p)

    if trim_output and O_pad != O:
        # NOTE: this slice is an extra HBM pass over the output; prefer
        # trim_output=False when the downstream consumer accepts padding.
        out = out[..., :O]
    return out


def final_layer_ref(x, t, scale_shift_table, w, b):
    """Pure-JAX f32 reference mirroring the PyTorch forward."""
    shift = scale_shift_table[:, 0:1, :] + t[:, None, :]   # (B, 1, C)
    scale = scale_shift_table[:, 1:2, :] + t[:, None, :]   # (B, 1, C)
    mu = jnp.mean(x, axis=-1, keepdims=True)
    var = jnp.mean((x - mu) ** 2, axis=-1, keepdims=True)
    xn = (x - mu) / jnp.sqrt(var + 1e-6)
    y = xn * (1.0 + scale) + shift
    return jnp.einsum("bnc,oc->bno", y, w) + b


if __name__ == "__main__":
    # Small, deterministic setup.
    B, N, C, O = 2, 8, 32, 16   # batch, tokens, model_channels, out_channels

    key = jax.random.PRNGKey(0)
    kx, kt, ktab, kw, kb = jax.random.split(key, 5)

    x = jax.random.normal(kx, (B, N, C), dtype=jnp.float32)
    t = jax.random.normal(kt, (B, C), dtype=jnp.float32)

    # Parameters initialized deterministically (shapes from __init__).
    scale_shift_table = (jax.random.normal(ktab, (1, 2, C), dtype=jnp.float32)
                         / (C ** 0.5))
    lim = 1.0 / (C ** 0.5)  # nn.Linear default uniform(-1/sqrt(C), 1/sqrt(C))
    w = jax.random.uniform(kw, (O, C), minval=-lim, maxval=lim,
                           dtype=jnp.float32)
    b = jax.random.uniform(kb, (O,), minval=-lim, maxval=lim,
                           dtype=jnp.float32)

    out = final_layer(x, t, scale_shift_table, w, b)
    out = jax.block_until_ready(out)

    ref = final_layer_ref(x, t, scale_shift_table, w, b)
    assert out.shape == (B, N, O)
    # bf16 MXU operands (f32 accumulation) -> looser tolerance than pure f32.
    assert jnp.allclose(out, ref, atol=5e-2, rtol=5e-2), "mismatch vs reference"

    print("KERNEL_OK")
</pallas_src>

<mosaic_0001>
module attributes {stable_mosaic.version = 11 : i64} {
  func.func @final_layer_kernel(%arg0: i32, %arg1: i32, %arg2: memref<1x8x32xf32, #tpu.memory_space<vmem>>, %arg3: memref<1x2x32xf32, #tpu.memory_space<vmem>>, %arg4: memref<32x128xbf16, #tpu.memory_space<vmem>>, %arg5: memref<1x128xf32, #tpu.memory_space<vmem>>, %arg6: memref<1x8x128xf32, #tpu.memory_space<vmem>>) attributes {dimension_semantics = [#tpu.dimension_semantics<parallel>, #tpu.dimension_semantics<parallel>], iteration_bounds = array<i64: 2, 1>, scalar_prefetch = 0 : i64, scratch_operands = 0 : i64, tpu.core_type = #tpu.core_type<tc>, window_params = [{transform_indices = @transform_0, window_bounds = array<i64: 1, 8, 32>}, {pipeline_mode = #tpu.pipeline_mode<synchronous>, transform_indices = @transform_1, window_bounds = array<i64: 1, 2, 32>}, {pipeline_mode = #tpu.pipeline_mode<synchronous>, transform_indices = @transform_2, window_bounds = array<i64: 32, 128>}, {pipeline_mode = #tpu.pipeline_mode<synchronous>, transform_indices = @transform_3, window_bounds = array<i64: 1, 128>}, {transform_indices = @transform_4, window_bounds = array<i64: 1, 8, 128>}]} {
    %c0 = arith.constant 0 : index
    %c0_0 = arith.constant 0 : index
    %c0_1 = arith.constant 0 : index
    %0 = vector.load %arg2[%c0, %c0_0, %c0_1] : memref<1x8x32xf32, #tpu.memory_space<vmem>>, vector<1x8x32xf32>
    %1 = vector.shape_cast %0 : vector<1x8x32xf32> to vector<8x32xf32>
    %cst = arith.constant dense<0.000000e+00> : vector<8xf32>
    %2 = vector.multi_reduction <add>, %1, %cst [1] : vector<8x32xf32> to vector<8xf32>
    %3 = vector.shape_cast %2 : vector<8xf32> to vector<8x1xf32>
    %cst_2 = arith.constant 3.200000e+01 : f32
    %4 = vector.broadcast %cst_2 : f32 to vector<8x1xf32>
    %5 = arith.divf %3, %4 : vector<8x1xf32>
    %6 = arith.mulf %1, %1 : vector<8x32xf32>
    %cst_3 = arith.constant dense<0.000000e+00> : vector<8xf32>
    %7 = vector.multi_reduction <add>, %6, %cst_3 [1] : vector<8x32xf32> to vector<8xf32>
    %8 = vector.shape_cast %7 : vector<8xf32> to vector<8x1xf32>
    %cst_4 = arith.constant 3.200000e+01 : f32
    %9 = vector.broadcast %cst_4 : f32 to vector<8x1xf32>
    %10 = arith.divf %8, %9 : vector<8x1xf32>
    %11 = arith.mulf %5, %5 : vector<8x1xf32>
    %12 = arith.subf %10, %11 : vector<8x1xf32>
    %cst_5 = arith.constant 0.000000e+00 : f32
    %13 = vector.broadcast %cst_5 : f32 to vector<8x1xf32>
    %14 = arith.maximumf %12, %13 : vector<8x1xf32>
    %15 = vector.broadcast %5 : vector<8x1xf32> to vector<8x32xf32>
    %16 = arith.subf %1, %15 : vector<8x32xf32>
    %cst_6 = arith.constant 9.99999997E-7 : f32
    %17 = vector.broadcast %cst_6 : f32 to vector<8x1xf32>
    %18 = arith.addf %14, %17 : vector<8x1xf32>
    %19 = math.rsqrt %18 : vector<8x1xf32>
    %20 = vector.broadcast %19 : vector<8x1xf32> to vector<8x32xf32>
    %21 = arith.mulf %16, %20 : vector<8x32xf32>
    %c0_7 = arith.constant 0 : index
    %c0_8 = arith.constant 0 : index
    %c0_9 = arith.constant 0 : index
    %22 = vector.load %arg3[%c0_7, %c0_8, %c0_9] : memref<1x2x32xf32, #tpu.memory_space<vmem>>, vector<1x1x32xf32>
    %23 = vector.shape_cast %22 : vector<1x1x32xf32> to vector<1x32xf32>
    %c0_10 = arith.constant 0 : index
    %c1 = arith.constant 1 : index
    %c0_11 = arith.constant 0 : index
    %24 = vector.load %arg3[%c0_10, %c1, %c0_11] : memref<1x2x32xf32, #tpu.memory_space<vmem>>, vector<1x1x32xf32>
    %25 = vector.shape_cast %24 : vector<1x1x32xf32> to vector<1x32xf32>
    %26 = vector.broadcast %25 : vector<1x32xf32> to vector<8x32xf32>
    %27 = arith.mulf %21, %26 : vector<8x32xf32>
    %28 = vector.broadcast %23 : vector<1x32xf32> to vector<8x32xf32>
    %29 = arith.addf %27, %28 : vector<8x32xf32>
    %30 = arith.truncf %29 : vector<8x32xf32> to vector<8x32xbf16>
    %c0_12 = arith.constant 0 : index
    %c0_13 = arith.constant 0 : index
    %31 = vector.load %arg4[%c0_12, %c0_13] : memref<32x128xbf16, #tpu.memory_space<vmem>>, vector<32x128xbf16>
    %cst_14 = arith.constant dense<0.000000e+00> : vector<8x128xf32>
    %32 = tpu.matmul %30, %31, %cst_14 {dimension_numbers = #tpu.dot_dimension_numbers<[1], [0], [0], [1], [0, 0, 1, 1], [], []>} : vector<8x32xbf16>, vector<32x128xbf16>, vector<8x128xf32> -> vector<8x128xf32>
    %c0_15 = arith.constant 0 : index
    %c0_16 = arith.constant 0 : index
    %33 = vector.load %arg5[%c0_15, %c0_16] : memref<1x128xf32, #tpu.memory_space<vmem>>, vector<1x128xf32>
    %34 = vector.broadcast %33 : vector<1x128xf32> to vector<8x128xf32>
    %35 = arith.addf %32, %34 : vector<8x128xf32>
    %c0_17 = arith.constant 0 : index
    %c0_18 = arith.constant 0 : index
    %c0_19 = arith.constant 0 : index
    %36 = vector.load %arg6[%c0_17, %c0_18, %c0_19] : memref<1x8x128xf32, #tpu.memory_space<vmem>>, vector<1x8x128xf32>
    %37 = vector.shape_cast %36 : vector<1x8x128xf32> to vector<8x128xf32>
    %38 = vector.shape_cast %35 : vector<8x128xf32> to vector<1x8x128xf32>
    tpu.vector_store %arg6[%c0_17, %c0_18, %c0_19], %38 {strides = array<i32>} : memref<1x8x128xf32, #tpu.memory_space<vmem>>, vector<1x8x128xf32>,
    return
  }
  func.func @transform_0(%arg0: i32, %arg1: i32) -> (i32, i32, i32) {
    %c0_i32 = arith.constant 0 : i32
    %c0_i32_0 = arith.constant 0 : i32
    return %arg0, %arg1, %c0_i32 : i32, i32, i32
  }
  func.func @transform_1(%arg0: i32, %arg1: i32) -> (i32, i32, i32) {
    %c0_i32 = arith.constant 0 : i32
    %c0_i32_0 = arith.constant 0 : i32
    %c0_i32_1 = arith.constant 0 : i32
    return %arg0, %c0_i32, %c0_i32_0 : i32, i32, i32
  }
  func.func @transform_2(%arg0: i32, %arg1: i32) -> (i32, i32) {
    %c0_i32 = arith.constant 0 : i32
    %c0_i32_0 = arith.constant 0 : i32
    %c0_i32_1 = arith.constant 0 : i32
    return %c0_i32, %c0_i32_0 : i32, i32
  }
  func.func @transform_3(%arg0: i32, %arg1: i32) -> (i32, i32) {
    %c0_i32 = arith.constant 0 : i32
    %c0_i32_0 = arith.constant 0 : i32
    %c0_i32_1 = arith.constant 0 : i32
    return %c0_i32, %c0_i32_0 : i32, i32
  }
  func.func @transform_4(%arg0: i32, %arg1: i32) -> (i32, i32, i32) {
    %c0_i32 = arith.constant 0 : i32
    %c0_i32_0 = arith.constant 0 : i32
    return %arg0, %arg1, %c0_i32 : i32, i32, i32
  }
}

module attributes {stable_mosaic.version = 11 : i64} {
  func.func @final_layer_kernel(%arg0: i32, %arg1: i32, %arg2: memref<1x8x32xf32, #tpu.memory_space<vmem>>, %arg3: memref<1x2x32xf32, #tpu.memory_space<vmem>>, %arg4: memref<32x128xbf16, #tpu.memory_space<vmem>>, %arg5: memref<1x128xf32, #tpu.memory_space<vmem>>, %arg6: memref<1x8x128xf32, #tpu.memory_space<vmem>>) attributes {dimension_semantics = [#tpu.dimension_semantics<parallel>, #tpu.dimension_semantics<parallel>], iteration_bounds = array<i64: 2, 1>, scalar_prefetch = 0 : i64, scratch_operands = 0 : i64, tpu.core_type = #tpu.core_type<tc>, window_params = [{transform_indices = @transform_0, window_bounds = array<i64: 1, 8, 32>}, {transform_indices = @transform_1, window_bounds = array<i64: 1, 2, 32>}, {pipeline_mode = #tpu.pipeline_mode<synchronous>, transform_indices = @transform_2, window_bounds = array<i64: 32, 128>}, {pipeline_mode = #tpu.pipeline_mode<synchronous>, transform_indices = @transform_3, window_bounds = array<i64: 1, 128>}, {transform_indices = @transform_4, window_bounds = array<i64: 1, 8, 128>}]} {
    %c0 = arith.constant 0 : index
    %c0_0 = arith.constant 0 : index
    %c0_1 = arith.constant 0 : index
    %0 = vector.load %arg2[%c0, %c0_0, %c0_1] : memref<1x8x32xf32, #tpu.memory_space<vmem>>, vector<1x8x32xf32>
    %1 = vector.shape_cast %0 : vector<1x8x32xf32> to vector<8x32xf32>
    %cst = arith.constant dense<0.000000e+00> : vector<8xf32>
    %2 = vector.multi_reduction <add>, %1, %cst [1] : vector<8x32xf32> to vector<8xf32>
    %3 = vector.shape_cast %2 : vector<8xf32> to vector<8x1xf32>
    %cst_2 = arith.constant 3.200000e+01 : f32
    %4 = vector.broadcast %cst_2 : f32 to vector<8x1xf32>
    %5 = arith.divf %3, %4 : vector<8x1xf32>
    %6 = arith.mulf %1, %1 : vector<8x32xf32>
    %cst_3 = arith.constant dense<0.000000e+00> : vector<8xf32>
    %7 = vector.multi_reduction <add>, %6, %cst_3 [1] : vector<8x32xf32> to vector<8xf32>
    %8 = vector.shape_cast %7 : vector<8xf32> to vector<8x1xf32>
    %cst_4 = arith.constant 3.200000e+01 : f32
    %9 = vector.broadcast %cst_4 : f32 to vector<8x1xf32>
    %10 = arith.divf %8, %9 : vector<8x1xf32>
    %11 = arith.mulf %5, %5 : vector<8x1xf32>
    %12 = arith.subf %10, %11 : vector<8x1xf32>
    %cst_5 = arith.constant 0.000000e+00 : f32
    %13 = vector.broadcast %cst_5 : f32 to vector<8x1xf32>
    %14 = arith.maximumf %12, %13 : vector<8x1xf32>
    %15 = vector.broadcast %5 : vector<8x1xf32> to vector<8x32xf32>
    %16 = arith.subf %1, %15 : vector<8x32xf32>
    %cst_6 = arith.constant 9.99999997E-7 : f32
    %17 = vector.broadcast %cst_6 : f32 to vector<8x1xf32>
    %18 = arith.addf %14, %17 : vector<8x1xf32>
    %19 = math.rsqrt %18 : vector<8x1xf32>
    %20 = vector.broadcast %19 : vector<8x1xf32> to vector<8x32xf32>
    %21 = arith.mulf %16, %20 : vector<8x32xf32>
    %c0_7 = arith.constant 0 : index
    %c0_8 = arith.constant 0 : index
    %c0_9 = arith.constant 0 : index
    %22 = vector.load %arg3[%c0_7, %c0_8, %c0_9] : memref<1x2x32xf32, #tpu.memory_space<vmem>>, vector<1x1x32xf32>
    %23 = vector.shape_cast %22 : vector<1x1x32xf32> to vector<1x32xf32>
    %c0_10 = arith.constant 0 : index
    %c1 = arith.constant 1 : index
    %c0_11 = arith.constant 0 : index
    %24 = vector.load %arg3[%c0_10, %c1, %c0_11] : memref<1x2x32xf32, #tpu.memory_space<vmem>>, vector<1x1x32xf32>
    %25 = vector.shape_cast %24 : vector<1x1x32xf32> to vector<1x32xf32>
    %26 = vector.broadcast %25 : vector<1x32xf32> to vector<8x32xf32>
    %27 = arith.mulf %21, %26 : vector<8x32xf32>
    %28 = vector.broadcast %23 : vector<1x32xf32> to vector<8x32xf32>
    %29 = arith.addf %27, %28 : vector<8x32xf32>
    %30 = arith.truncf %29 : vector<8x32xf32> to vector<8x32xbf16>
    %c0_12 = arith.constant 0 : index
    %c0_13 = arith.constant 0 : index
    %31 = vector.load %arg4[%c0_12, %c0_13] : memref<32x128xbf16, #tpu.memory_space<vmem>>, vector<32x128xbf16>
    %cst_14 = arith.constant dense<0.000000e+00> : vector<8x128xf32>
    %32 = tpu.matmul %30, %31, %cst_14 {dimension_numbers = #tpu.dot_dimension_numbers<[1], [0], [0], [1], [0, 0, 1, 1], [], []>} : vector<8x32xbf16>, vector<32x128xbf16>, vector<8x128xf32> -> vector<8x128xf32>
    %c0_15 = arith.constant 0 : index
    %c0_16 = arith.constant 0 : index
    %33 = vector.load %arg5[%c0_15, %c0_16] : memref<1x128xf32, #tpu.memory_space<vmem>>, vector<1x128xf32>
    %34 = vector.broadcast %33 : vector<1x128xf32> to vector<8x128xf32>
    %35 = arith.addf %32, %34 : vector<8x128xf32>
    %c0_17 = arith.constant 0 : index
    %c0_18 = arith.constant 0 : index
    %c0_19 = arith.constant 0 : index
    %36 = vector.load %arg6[%c0_17, %c0_18, %c0_19] : memref<1x8x128xf32, #tpu.memory_space<vmem>>, vector<1x8x128xf32>
    %37 = vector.shape_cast %36 : vector<1x8x128xf32> to vector<8x128xf32>
    %38 = vector.shape_cast %35 : vector<8x128xf32> to vector<1x8x128xf32>
    tpu.vector_store %arg6[%c0_17, %c0_18, %c0_19], %38 {strides = array<i32>} : memref<1x8x128xf32, #tpu.memory_space<vmem>>, vector<1x8x128xf32>,
    return
  }
  func.func @transform_0(%arg0: i32, %arg1: i32) -> (i32, i32, i32) {
    %c0_i32 = arith.constant 0 : i32
    %c0_i32_0 = arith.constant 0 : i32
    return %arg0, %arg1, %c0_i32 : i32, i32, i32
  }
  func.func @transform_1(%arg0: i32, %arg1: i32) -> (i32, i32, i32) {
    %c0_i32 = arith.constant 0 : i32
    %c0_i32_0 = arith.constant 0 : i32
    %c0_i32_1 = arith.constant 0 : i32
    return %arg0, %c0_i32, %c0_i32_0 : i32, i32, i32
  }
  func.func @transform_2(%arg0: i32, %arg1: i32) -> (i32, i32) {
    %c0_i32 = arith.constant 0 : i32
    %c0_i32_0 = arith.constant 0 : i32
    %c0_i32_1 = arith.constant 0 : i32
    return %c0_i32, %c0_i32_0 : i32, i32
  }
  func.func @transform_3(%arg0: i32, %arg1: i32) -> (i32, i32) {
    %c0_i32 = arith.constant 0 : i32
    %c0_i32_0 = arith.constant 0 : i32
    %c0_i32_1 = arith.constant 0 : i32
    return %c0_i32, %c0_i32_0 : i32, i32
  }
  func.func @transform_4(%arg0: i32, %arg1: i32) -> (i32, i32, i32) {
    %c0_i32 = arith.constant 0 : i32
    %c0_i32_0 = arith.constant 0 : i32
    return %arg0, %arg1, %c0_i32 : i32, i32, i32
  }
}

</mosaic_0001>

<llo_original>
// kernel: tpu_custom_call.1
$region0: #{tpu_custom_call.1}
  #allocation0 [shape = 'u32[]', space=smem, size = 0x4, offset = 0x4, fixed_abs, tag = 'smem constant byte address 0x4 - core index']
  #allocation1 [shape = 'u32[144,128]{1,0:T(1,128)}', space=vmem, size = 0x12000, scoped, tag = 'internal scratch']
  %s0 = inlined_call_operand.hbm [shape: f32[2,8,32], index: 0, kind: input, shape index: {}]
  %s1 = inlined_call_operand.hbm [shape: f32[2,2,32], index: 1, kind: input, shape index: {}]
  %s2 = inlined_call_operand.hbm [shape: bf16[32,128], index: 2, kind: input, shape index: {}]
  %s3 = inlined_call_operand.vmem [shape: f32[1,128], index: 3, kind: input, shape index: {}]
  %s4 = inlined_call_operand.hbm [shape: f32[2,8,128], index: 4, kind: output, shape index: {}]
  %s5 = sld [smem:[#allocation0]]
  $region61: #{tpu_custom_call.1} parent=0
    _
  %s7 = ssub.s32 1, %s5
  %s8 = scalar_select 0, %s7, %s5
  $region1: #{tpu_custom_call.1} parent=0
    #allocation2 [shape = 'u8[8192]{0}', space=vmem, size = 0x2000, scoped, tag = 'input window, operand 0']
    #allocation3 [shape = 's32[2]{0}', space=sflag, size = 0x8, scoped, tag = 'scoped memory for tpu_custom_call.1']
    #allocation4 [shape = 's32[2]{0}', space=sflag, size = 0x8, scoped, tag = 'scoped memory for tpu_custom_call.1']
    #allocation5 [shape = 'u8[1024]{0}', space=vmem, size = 0x400, scoped, tag = 'input window, operand 1, single buffered']
    #allocation6 [shape = 's32[1]{0}', space=sflag, size = 0x4, scoped, tag = 'scoped memory for tpu_custom_call.1']
    #allocation7 [shape = 'u8[8192]{0}', space=vmem, size = 0x2000, scoped, tag = 'input window, operand 2, single buffered']
    #allocation8 [shape = 'u8[8192]{0}', space=vmem, size = 0x2000, scoped, tag = 'output window, operand 0']
    %9 = vsyncpa [#allocation3], 0
    %s10 = scalar_lea.sflag [#allocation3], 1
    %11 = vsyncpa %s10, 0
    %12 = vsyncpa [#allocation6], 0
    %13 = vsyncpa [#allocation4], 0
    %s14 = scalar_lea.sflag [#allocation4], 1
    %15 = vsyncpa %s14, 0
    loop: start=0, step=1, limit=4
    $region2: #{tpu_custom_call.1} parent=1 // loop_pre_header
      _
    $region3: #{tpu_custom_call.1} parent=1 // loop_header
      %s17 = sphi 0, %s21
      %p18 = scmp.ge.s32.totalorder %s17, 4
      %s24 = sphi 0, %s36
      %s25 = sphi 0, %s32
      %s26 = sphi 0, %s24
      %s27 = sphi 0, %s25
      %s28 = sphi 0, %s26
      %s29 = sphi 0, %s27
      %s41 = sphi 0, %s43
      %s44 = sphi 0, %s41
      %s45 = sphi 0, %s44
      %s61 = sphi 0, %s45
      %s67 = sphi 0, %s69
      %s70 = sphi 0, %s67
      %s71 = sphi 0, %s70
      %s87 = sphi 0, %s71
      %s91 = sphi 0, %s91
      %s93 = sphi 0, %s91
      %s94 = sphi 0, %s93
      %s108 = sphi 0, %s94
      %s112 = sphi 0, %s112
      %s114 = sphi 0, %s112
      %s115 = sphi 0, %s114
      %s129 = sphi 0, %s115
      %s137 = sphi 0, %s139
      %s140 = sphi 0, %s137
      %s141 = sphi 0, %s140
      %s157 = sphi 0, %s141
    $region4: #{tpu_custom_call.1} parent=1 // loop_header_branch
      %20 = sbr.rel (%p18) target = $region8
    $region5: #{tpu_custom_call.1} parent=1 // loop_body
      %s22 = ssub.s32 %s17, 1
      %s23 = ssub.s32 %s17, 2
      %s30 = sadd.s32 1, %s25
      %p31 = scmp.ge.s32.totalorder %s30, 1
      %s32 = scalar_select %p31, 0, %s30
      %s33 = sadd.s32 1, %s24
      %s34 = scalar_select %p31, %s33, %s24
      %p35 = scmp.ge.s32.totalorder %s34, 2
      %s36 = scalar_select %p35, 0, %s34
      %s37 = ssub.s32 %s24, %s36
      %s38 = ssub.s32 %s25, %s32
      %s39 = sor.u32 %s37, %s38
      %p40 = scmp.eq.s32.totalorder %s39, 0
      %s42 = sadd.s32 %s41, 1
      %s43 = scalar_select %p40, %s41, %s42
      %p46 = pneg %p40
      %p47 = scmp.eq.s32.totalorder %s17, 1
      %p48 = por %p46, %p47
      %p49 = scmp.ne.s32.totalorder %s41, %s44
      %p50 = scmp.eq.s32.totalorder %s17, 0
      %p51 = por %p49, %p50
      %p52 = scmp.ne.s32.totalorder %s41, %s44
      %p53 = scmp.eq.s32.totalorder %s22, 1
      %p54 = por %p52, %p53
      %p55 = scmp.ne.s32.totalorder %s44, %s45
      %p56 = scmp.eq.s32.totalorder %s22, 0
      %p57 = por %p55, %p56
      %p58 = scmp.ne.s32.totalorder %s44, %s45
      %p59 = scmp.eq.s32.totalorder %s23, 1
      %p60 = por %p58, %p59
      %p62 = scmp.ne.s32.totalorder %s45, %s61
      %p63 = scmp.eq.s32.totalorder %s23, 0
      %p64 = por %p62, %p63
      %s65 = ssub.s32 %s24, %s36
      %p66 = scmp.eq.s32.totalorder %s65, 0
      %s68 = sadd.s32 %s67, 1
      %s69 = scalar_select %p66, %s67, %s68
      %p72 = pneg %p66
      %p73 = scmp.eq.s32.totalorder %s17, 1
      %p74 = por %p72, %p73
      %p75 = scmp.ne.s32.totalorder %s67, %s70
      %p76 = scmp.eq.s32.totalorder %s17, 0
      %p77 = por %p75, %p76
      %p78 = scmp.ne.s32.totalorder %s67, %s70
      %p79 = scmp.eq.s32.totalorder %s22, 1
      %p80 = por %p78, %p79
      %p81 = scmp.ne.s32.totalorder %s70, %s71
      %p82 = scmp.eq.s32.totalorder %s22, 0
      %p83 = por %p81, %p82
      %p84 = scmp.ne.s32.totalorder %s70, %s71
      %p85 = scmp.eq.s32.totalorder %s23, 1
      %p86 = por %p84, %p85
      %p88 = scmp.ne.s32.totalorder %s71, %s87
      %p89 = scmp.eq.s32.totalorder %s23, 0
      %p90 = por %p88, %p89
      %s92 = sadd.s32 %s91, 1
      %p95 = scmp.eq.s32.totalorder %s17, 1
      %p96 = scmp.ne.s32.totalorder %s91, %s93
      %p97 = scmp.eq.s32.totalorder %s17, 0
      %p98 = por %p96, %p97
      %p99 = scmp.ne.s32.totalorder %s91, %s93
      %p100 = scmp.eq.s32.totalorder %s22, 1
      %p101 = por %p99, %p100
      %p102 = scmp.ne.s32.totalorder %s93, %s94
      %p103 = scmp.eq.s32.totalorder %s22, 0
      %p104 = por %p102, %p103
      %p105 = scmp.ne.s32.totalorder %s93, %s94
      %p106 = scmp.eq.s32.totalorder %s23, 1
      %p107 = por %p105, %p106
      %p109 = scmp.ne.s32.totalorder %s94, %s108
      %p110 = scmp.eq.s32.totalorder %s23, 0
      %p111 = por %p109, %p110
      %s113 = sadd.s32 %s112, 1
      %p116 = scmp.eq.s32.totalorder %s17, 1
      %p117 = scmp.ne.s32.totalorder %s112, %s114
      %p118 = scmp.eq.s32.totalorder %s17, 0
      %p119 = por %p117, %p118
      %p120 = scmp.ne.s32.totalorder %s112, %s114
      %p121 = scmp.eq.s32.totalorder %s22, 1
      %p122 = por %p120, %p121
      %p123 = scmp.ne.s32.totalorder %s114, %s115
      %p124 = scmp.eq.s32.totalorder %s22, 0
      %p125 = por %p123, %p124
      %p126 = scmp.ne.s32.totalorder %s114, %s115
      %p127 = scmp.eq.s32.totalorder %s23, 1
      %p128 = por %p126, %p127
      %p130 = scmp.ne.s32.totalorder %s115, %s129
      %p131 = scmp.eq.s32.totalorder %s23, 0
      %p132 = por %p130, %p131
      %s133 = ssub.s32 %s24, %s36
      %s134 = ssub.s32 %s25, %s32
      %s135 = sor.u32 %s133, %s134
      %p136 = scmp.eq.s32.totalorder %s135, 0
      %s138 = sadd.s32 %s137, 1
      %s139 = scalar_select %p136, %s137, %s138
      %p142 = pneg %p136
      %p143 = scmp.eq.s32.totalorder %s17, 1
      %p144 = por %p142, %p143
      %p145 = scmp.ne.s32.totalorder %s137, %s140
      %p146 = scmp.eq.s32.totalorder %s17, 0
      %p147 = por %p145, %p146
      %p148 = scmp.ne.s32.totalorder %s137, %s140
      %p149 = scmp.eq.s32.totalorder %s22, 1
      %p150 = por %p148, %p149
      %p151 = scmp.ne.s32.totalorder %s140, %s141
      %p152 = scmp.eq.s32.totalorder %s22, 0
      %p153 = por %p151, %p152
      %p154 = scmp.ne.s32.totalorder %s140, %s141
      %p155 = scmp.eq.s32.totalorder %s23, 1
      %p156 = por %p154, %p155
      %p158 = scmp.ne.s32.totalorder %s141, %s157
      %p159 = scmp.eq.s32.totalorder %s23, 0
      %p160 = por %p158, %p159
      %p161 = scmp.le.s32.totalorder 1, %s17
      %p162 = scmp.lt.s32.totalorder %s17, 3
      %p163 = pnand %p161, %p162
      %p164 = pneg %p163
      // Predicated region
      $region9: #{tpu_custom_call.1} parent=5 // pred_check
        _
      $region10: #{tpu_custom_call.1} parent=5 // pred_check_branch
        %166 = sbr.rel (%p163) target = $region12
      $region11: #{tpu_custom_call.1} parent=5 // pred_region
        %s167 = ssub.s32 %s17, 1
        // Predicated region
        $region13: #{tpu_custom_call.1} parent=11 // pred_check
          %p168 = pneg %p83
        $region14: #{tpu_custom_call.1} parent=11 // pred_check_branch
          %170 = sbr.rel (%p168) target = $region16
        $region15: #{tpu_custom_call.1} parent=11 // pred_region
          %s172 = ssub.s32 32, 32
          %173 = vsyncadd [#allocation6], %s172
          %s174 = smul.addr %s26, 32
          %s175 = scalar_lea.hbm %s1, %s174
          %s177 = sshll.u32 [#allocation5], 4
          %s178 = int_to_ptr.vmem [resolvable:$true] %s177
          %180 = dma.hbm_to_vmem [thread:$0]  %s175, 32, %s178, [#allocation6]
        $region16: #{tpu_custom_call.1} parent=11 // pred_fallthru
          _
        // Predicated region
        $region17: #{tpu_custom_call.1} parent=11 // pred_check
          %p181 = pneg %p104
        $region18: #{tpu_custom_call.1} parent=11 // pred_check_branch
          %183 = sbr.rel (%p181) target = $region20
        $region19: #{tpu_custom_call.1} parent=11 // pred_region
          %s185 = ssub.s32 256, 256
          %186 = vsyncadd [#allocation6], %s185
          %s187 = sshll.u32 [#allocation7], 4
          %s188 = int_to_ptr.vmem [resolvable:$true] %s187
          %193 = dma.hbm_to_vmem [thread:$0]  %s2, 256, %s188, [#allocation6], 64, 64, 4
        $region20: #{tpu_custom_call.1} parent=11 // pred_fallthru
          _
        // Predicated region
        $region21: #{tpu_custom_call.1} parent=11 // pred_check
          %p194 = pneg %p125
        $region22: #{tpu_custom_call.1} parent=11 // pred_check_branch
          %196 = sbr.rel (%p194) target = $region24
        $region23: #{tpu_custom_call.1} parent=11 // pred_region
          _
        $region24: #{tpu_custom_call.1} parent=11 // pred_fallthru
          _
      $region12: #{tpu_custom_call.1} parent=5 // pred_fallthru
        _
      %p197 = scmp.lt.s32.totalorder %s17, 2
      // Predicated region
      $region25: #{tpu_custom_call.1} parent=5 // pred_check
        %p198 = pneg %p197
      $region26: #{tpu_custom_call.1} parent=5 // pred_check_branch
        %200 = sbr.rel (%p198) target = $region28
      $region27: #{tpu_custom_call.1} parent=5 // pred_region
        // Predicated region
        $region29: #{tpu_custom_call.1} parent=27 // pred_check
          %p201 = pneg %p51
        $region30: #{tpu_custom_call.1} parent=27 // pred_check_branch
          %203 = sbr.rel (%p201) target = $region32
        $region31: #{tpu_custom_call.1} parent=27 // pred_region
          %s204 = sand.u32 %s41, 1
          %s205 = scalar_lea.sflag [#allocation3], %s204
          %s206 = sand.u32 %s41, 1
          %s207 = smul.addr %s206, 8
          %s208 = scalar_lea.vmem [#allocation2], %s207
          %s210 = ssub.s32 128, 128
          %211 = vsyncadd %s205, %s210
          %s212 = sadd.s32 %s25, %s24
          %s213 = smul.addr %s212, 128
          %s214 = scalar_lea.hbm %s0, %s213
          %s216 = sshll.u32 %s208, 4
          %s217 = int_to_ptr.vmem [resolvable:$true] %s216
          %219 = dma.hbm_to_vmem [thread:$0]  %s214, 128, %s217, %s205
        $region32: #{tpu_custom_call.1} parent=27 // pred_fallthru
          _
      $region28: #{tpu_custom_call.1} parent=5 // pred_fallthru
        _
      %p220 = scmp.le.s32.totalorder 1, %s17
      %p221 = scmp.lt.s32.totalorder %s17, 3
      %p222 = pnand %p220, %p221
      %p223 = pneg %p222
      // Predicated region
      $region33: #{tpu_custom_call.1} parent=5 // pred_check
        _
      $region34: #{tpu_custom_call.1} parent=5 // pred_check_branch
        %225 = sbr.rel (%p222) target = $region36
      $region35: #{tpu_custom_call.1} parent=5 // pred_region
        %s226 = ssub.s32 %s17, 1
        %s227 = sand.u32 %s44, 1
        %s228 = scalar_lea.sflag [#allocation3], %s227
        %s229 = sand.u32 %s44, 1
        %s230 = smul.addr %s229, 8
        %s231 = scalar_lea.vmem [#allocation2], %s230
        // Predicated region
        $region37: #{tpu_custom_call.1} parent=35 // pred_check
          %p232 = pneg %p57
        $region38: #{tpu_custom_call.1} parent=35 // pred_check_branch
          %234 = sbr.rel (%p232) target = $region40
        $region39: #{tpu_custom_call.1} parent=35 // pred_region
          %235 = dma.done %s228, 128
        $region40: #{tpu_custom_call.1} parent=35 // pred_fallthru
          _
        // Predicated region
        $region41: #{tpu_custom_call.1} parent=35 // pred_check
          %p236 = pneg %p83
        $region42: #{tpu_custom_call.1} parent=35 // pred_check_branch
          %238 = sbr.rel (%p236) target = $region44
        $region43: #{tpu_custom_call.1} parent=35 // pred_region
          %239 = dma.done [#allocation6], 32
        $region44: #{tpu_custom_call.1} parent=35 // pred_fallthru
          _
        // Predicated region
        $region45: #{tpu_custom_call.1} parent=35 // pred_check
          %p240 = pneg %p104
        $region46: #{tpu_custom_call.1} parent=35 // pred_check_branch
          %242 = sbr.rel (%p240) target = $region48
        $region47: #{tpu_custom_call.1} parent=35 // pred_region
          %243 = dma.done [#allocation6], 256
        $region48: #{tpu_custom_call.1} parent=35 // pred_fallthru
          _
        %s244 = sand.u32 %s44, 1
        %s245 = scalar_lea.sflag [#allocation3], %s244
        %s246 = sand.u32 %s44, 1
        %s247 = smul.addr %s246, 8
        %s248 = scalar_lea.vmem [#allocation2], %s247
        %p249 = pneg %p57
        %p250 = pneg %p54
        %p251 = pneg %p83
        %p252 = pneg %p80
        %p253 = pneg %p104
        %p254 = pneg %p101
        %p255 = pneg %p125
        %p256 = pneg %p122
        %p257 = pneg %p153
        %p258 = pneg %p150
        %s259 = sand.u32 %s140, 1
        %s260 = scalar_lea.sflag [#allocation4], %s259
        %s261 = sand.u32 %s140, 1
        %s262 = smul.addr %s261, 8
        %s263 = scalar_lea.vmem [#allocation8], %s262
        %v265 = vld [vmem:[%s231] sm:$0xff]
        %vm266 = vcmask 261120
        %v267 = vsel %vm266, %v265, 0.0
        %268 = vadd.xlane.f32.xlu0 %v267
        %v269 = vpop.xlane.xlu0 %268
        %v270 = vrcp.pop 32.0
        %v271 = vmul.f32 %v269, %v270
        %v272 = vmul.f32 %v265, %v265
        %v273 = vsel %vm266, %v272, 0.0
        %274 = vadd.xlane.f32.xlu0 %v273
        %v275 = vpop.xlane.xlu0 %274
        %v276 = vmul.f32 %v275, %v270
        %v277 = vmul.f32 %v271, %v271
        %v278 = vsub.f32 %v276, %v277
        %v279 = vmax.f32 %v278, 0.0
        %v280 = vsub.f32 %v265, %v271
        %v281 = vadd.f32 %v279, 1e-06
        %v282 = vrsqrt.pop %v281
        %v283 = vmul.f32 %v280, %v282
        %v284 = vld [vmem:[#allocation5] sm:$0x1]
        %v285 = vld [vmem:[#allocation5 + $0x1] sm:$0x1]
        %v286 = vlaneseq
        %v287 = vshrl.u32 %v286, 7
        %v288 = vsub.s32 0, %v287
        %v289 = vrot.slane %v285, %v288
        %v290 = vmul.f32 %v283, %v289
        %v291 = vlaneseq
        %v292 = vshrl.u32 %v291, 7
        %v293 = vsub.s32 0, %v292
        %v294 = vrot.slane %v284, %v293
        %v295 = vadd.f32 %v290, %v294
        %v296 = vpack.c.bf16 %v295, %v295
        %v297 = vld [vmem:[#allocation7] sm:$0xf]
        %v298 = vld [vmem:[#allocation7 + $0x4] sm:$0xf]
        %v299 = vld [vmem:[#allocation7 + $0x8] sm:$0xf]
        %v300 = vld [vmem:[#allocation7 + $0xc] sm:$0xf]
        %v301 = vld [vmem:[%s3] sm:$0x1]
        %v303 = vlaneseq
        %v304 = vshrl.u32 %v303, 7
        %v305 = vsub.s32 0, %v304
        %v306 = vrot.slane %v301, %v305
        %v312 = vunpack.c.l.b16 %v297
        %v313 = vunpack.c.l.b16 %v298
        %v314 = vunpack.c.l.b16 %v299
        %v315 = vunpack.c.l.b16 %v300
        %v316 = vpack.c.b16 %v313, %v312
        %v317 = vpack.c.b16 %v315, %v314
        %v321 = vsel %vm266, %v296, 0
        %323 = vmatprep.subr.bf16.mxu0 0
        %324 = vmatpush1.bf16.msra.mxu0 %v316
        %325 = vmatprep.subr.bf16.mxu0 0
        %326 = vmatpush1.bf16.msra.mxu0 %v317
        %327 = vmatprep.subr.bf16.mxu0 0
        %328 = vmatpush1.bf16.msra.mxu0 0
        %329 = vmatprep.subr.bf16.mxu0 0
        %330 = vmatpush1.bf16.msra.mxu0 0
        %331 = vmatprep.subr.bf16.mxu0 0
        %332 = vmatpush1.bf16.msra.mxu0 0
        %333 = vmatprep.subr.bf16.mxu0 0
        %334 = vmatpush1.bf16.msra.mxu0 0
        %335 = vmatprep.subr.bf16.mxu0 0
        %336 = vmatpush1.bf16.msra.mxu0 0
        %337 = vmatprep.subr.bf16.mxu0 0
        %338 = vmatpush1.bf16.msra.mxu0 0
        %339 = vmatprep.subr.bf16.mxu0 0
        %340 = vmatpush1.bf16.msra.mxu0 0
        %341 = vmatprep.subr.bf16.mxu0 0
        %342 = vmatpush1.bf16.msra.mxu0 0
        %343 = vmatprep.subr.bf16.mxu0 0
        %344 = vmatpush1.bf16.msra.mxu0 0
        %345 = vmatprep.subr.bf16.mxu0 0
        %346 = vmatpush1.bf16.msra.mxu0 0
        %347 = vmatprep.subr.bf16.mxu0 0
        %348 = vmatpush1.bf16.msra.mxu0 0
        %349 = vmatprep.subr.bf16.mxu0 0
        %350 = vmatpush1.bf16.msra.mxu0 0
        %351 = vmatprep.subr.bf16.mxu0 0
        %352 = vmatpush1.bf16.msra.mxu0 0
        %353 = vmatprep.subr.bf16.mxu0 0
        %354 = vmatpush1.bf16.msra.mxu0 0
        %355 = vmatprep.mubr.bf16.mxu0 0
        %356 = vmatmul.mubr.bf16.gmra.mrb[0].mxu0 %v321
        %v357 = vpop.f32.mrb[0].mxu0
        %v358 = vadd.f32 %v306, %v357
        %v359 = vpop.f32.mrb[0].mxu0
        %v360 = vpop.f32.mrb[0].mxu0
        %v361 = vpop.f32.mrb[0].mxu0
        %362 = vdwg.mxu0
        %363 = vst [vmem:[%s263] sm:$0xff] %v358
        %s364 = sand.u32 %s140, 1
        %s365 = scalar_lea.sflag [#allocation4], %s364
        %s366 = sand.u32 %s140, 1
        %s367 = smul.addr %s366, 8
        %s368 = scalar_lea.vmem [#allocation8], %s367
        // Predicated region
        $region49: #{tpu_custom_call.1} parent=35 // pred_check
          %p369 = pneg %p150
        $region50: #{tpu_custom_call.1} parent=35 // pred_check_branch
          %371 = sbr.rel (%p369) target = $region52
        $region51: #{tpu_custom_call.1} parent=35 // pred_region
          %s373 = ssub.s32 128, 128
          %374 = vsyncadd %s365, %s373
          %s375 = sadd.s32 %s27, %s26
          %s376 = smul.addr %s375, 128
          %s377 = scalar_lea.hbm %s4, %s376
          %s379 = sshll.u32 %s368, 4
          %s380 = int_to_ptr.vmem [resolvable:$true] %s379
          %382 = dma.vmem_to_hbm [thread:$0]  %s380, 128, %s377, %s365
        $region52: #{tpu_custom_call.1} parent=35 // pred_fallthru
          _
      $region36: #{tpu_custom_call.1} parent=5 // pred_fallthru
        _
      %p383 = scmp.le.s32.totalorder 2, %s17
      // Predicated region
      $region53: #{tpu_custom_call.1} parent=5 // pred_check
        %p384 = pneg %p383
      $region54: #{tpu_custom_call.1} parent=5 // pred_check_branch
        %386 = sbr.rel (%p384) target = $region56
      $region55: #{tpu_custom_call.1} parent=5 // pred_region
        %s387 = ssub.s32 %s17, 2
        // Predicated region
        $region57: #{tpu_custom_call.1} parent=55 // pred_check
          %p388 = pneg %p156
        $region58: #{tpu_custom_call.1} parent=55 // pred_check_branch
          %390 = sbr.rel (%p388) target = $region60
        $region59: #{tpu_custom_call.1} parent=55 // pred_region
          %s391 = sand.u32 %s141, 1
          %s392 = scalar_lea.sflag [#allocation4], %s391
          %s393 = sand.u32 %s141, 1
          %s394 = smul.addr %s393, 8
          %s395 = scalar_lea.vmem [#allocation8], %s394
          %396 = dma.done %s392, 128
        $region60: #{tpu_custom_call.1} parent=55 // pred_fallthru
          _
      $region56: #{tpu_custom_call.1} parent=5 // pred_fallthru
        _
    $region6: #{tpu_custom_call.1} parent=1 // loop_footer
      %s21 = sadd.s32 1, %s17
    $region7: #{tpu_custom_call.1} parent=1 // loop_footer_branch
      %16 = sbr.rel target = $region3
    $region8: #{tpu_custom_call.1} parent=1 // loop_exit
      _
    %397 = vsyncpa [#allocation3], 1
    %s398 = scalar_lea.sflag [#allocation3], 1
    %399 = vsyncpa %s398, 1
    %400 = vsyncpa [#allocation6], 1
    %401 = vsyncpa [#allocation4], 1
    %s402 = scalar_lea.sflag [#allocation4], 1
    %403 = vsyncpa %s402, 1

// kernel: tpu_custom_call.1
$region0: #{tpu_custom_call.1}
  #allocation0 [shape = 'u32[]', space=smem, size = 0x4, offset = 0x4, fixed_abs, tag = 'smem constant byte address 0x4 - core index']
  #allocation1 [shape = 'u32[144,128]{1,0:T(1,128)}', space=vmem, size = 0x12000, scoped, tag = 'internal scratch']
  %s0 = inlined_call_operand.hbm [shape: f32[2,8,32], index: 0, kind: input, shape index: {}]
  %s1 = inlined_call_operand.hbm [shape: f32[2,2,32], index: 1, kind: input, shape index: {}]
  %s2 = inlined_call_operand.hbm [shape: bf16[32,128], index: 2, kind: input, shape index: {}]
  %s3 = inlined_call_operand.vmem [shape: f32[1,128], index: 3, kind: input, shape index: {}]
  %s4 = inlined_call_operand.hbm [shape: f32[2,8,128], index: 4, kind: output, shape index: {}]
  %s5 = sld [smem:[#allocation0]]
  $region61: #{tpu_custom_call.1} parent=0
    _
  %s7 = ssub.s32 1, %s5
  %s8 = scalar_select 0, %s7, %s5
  $region1: #{tpu_custom_call.1} parent=0
    #allocation2 [shape = 'u8[8192]{0}', space=vmem, size = 0x2000, scoped, tag = 'input window, operand 0']
    #allocation3 [shape = 's32[2]{0}', space=sflag, size = 0x8, scoped, tag = 'scoped memory for tpu_custom_call.1']
    #allocation4 [shape = 's32[2]{0}', space=sflag, size = 0x8, scoped, tag = 'scoped memory for tpu_custom_call.1']
    #allocation5 [shape = 'u8[2048]{0}', space=vmem, size = 0x800, scoped, tag = 'input window, operand 1']
    #allocation6 [shape = 's32[2]{0}', space=sflag, size = 0x8, scoped, tag = 'scoped memory for tpu_custom_call.1']
    #allocation7 [shape = 'u8[8192]{0}', space=vmem, size = 0x2000, scoped, tag = 'input window, operand 2, single buffered']
    #allocation8 [shape = 'u8[8192]{0}', space=vmem, size = 0x2000, scoped, tag = 'output window, operand 0']
    %9 = vsyncpa [#allocation3], 0
    %s10 = scalar_lea.sflag [#allocation3], 1
    %11 = vsyncpa %s10, 0
    %12 = vsyncpa [#allocation6], 0
    %s13 = scalar_lea.sflag [#allocation6], 1
    %14 = vsyncpa %s13, 0
    %15 = vsyncpa [#allocation4], 0
    %s16 = scalar_lea.sflag [#allocation4], 1
    %17 = vsyncpa %s16, 0
    loop: start=0, step=1, limit=4
    $region2: #{tpu_custom_call.1} parent=1 // loop_pre_header
      _
    $region3: #{tpu_custom_call.1} parent=1 // loop_header
      %s19 = sphi 0, %s23
      %p20 = scmp.ge.s32.totalorder %s19, 4
      %s26 = sphi 0, %s38
      %s27 = sphi 0, %s34
      %s28 = sphi 0, %s26
      %s29 = sphi 0, %s27
      %s30 = sphi 0, %s28
      %s31 = sphi 0, %s29
      %s43 = sphi 0, %s45
      %s46 = sphi 0, %s43
      %s47 = sphi 0, %s46
      %s63 = sphi 0, %s47
      %s69 = sphi 0, %s71
      %s72 = sphi 0, %s69
      %s73 = sphi 0, %s72
      %s89 = sphi 0, %s73
      %s93 = sphi 0, %s93
      %s95 = sphi 0, %s93
      %s96 = sphi 0, %s95
      %s110 = sphi 0, %s96
      %s114 = sphi 0, %s114
      %s116 = sphi 0, %s114
      %s117 = sphi 0, %s116
      %s131 = sphi 0, %s117
      %s139 = sphi 0, %s141
      %s142 = sphi 0, %s139
      %s143 = sphi 0, %s142
      %s159 = sphi 0, %s143
    $region4: #{tpu_custom_call.1} parent=1 // loop_header_branch
      %22 = sbr.rel (%p20) target = $region8
    $region5: #{tpu_custom_call.1} parent=1 // loop_body
      %s24 = ssub.s32 %s19, 1
      %s25 = ssub.s32 %s19, 2
      %s32 = sadd.s32 1, %s27
      %p33 = scmp.ge.s32.totalorder %s32, 1
      %s34 = scalar_select %p33, 0, %s32
      %s35 = sadd.s32 1, %s26
      %s36 = scalar_select %p33, %s35, %s26
      %p37 = scmp.ge.s32.totalorder %s36, 2
      %s38 = scalar_select %p37, 0, %s36
      %s39 = ssub.s32 %s26, %s38
      %s40 = ssub.s32 %s27, %s34
      %s41 = sor.u32 %s39, %s40
      %p42 = scmp.eq.s32.totalorder %s41, 0
      %s44 = sadd.s32 %s43, 1
      %s45 = scalar_select %p42, %s43, %s44
      %p48 = pneg %p42
      %p49 = scmp.eq.s32.totalorder %s19, 1
      %p50 = por %p48, %p49
      %p51 = scmp.ne.s32.totalorder %s43, %s46
      %p52 = scmp.eq.s32.totalorder %s19, 0
      %p53 = por %p51, %p52
      %p54 = scmp.ne.s32.totalorder %s43, %s46
      %p55 = scmp.eq.s32.totalorder %s24, 1
      %p56 = por %p54, %p55
      %p57 = scmp.ne.s32.totalorder %s46, %s47
      %p58 = scmp.eq.s32.totalorder %s24, 0
      %p59 = por %p57, %p58
      %p60 = scmp.ne.s32.totalorder %s46, %s47
      %p61 = scmp.eq.s32.totalorder %s25, 1
      %p62 = por %p60, %p61
      %p64 = scmp.ne.s32.totalorder %s47, %s63
      %p65 = scmp.eq.s32.totalorder %s25, 0
      %p66 = por %p64, %p65
      %s67 = ssub.s32 %s26, %s38
      %p68 = scmp.eq.s32.totalorder %s67, 0
      %s70 = sadd.s32 %s69, 1
      %s71 = scalar_select %p68, %s69, %s70
      %p74 = pneg %p68
      %p75 = scmp.eq.s32.totalorder %s19, 1
      %p76 = por %p74, %p75
      %p77 = scmp.ne.s32.totalorder %s69, %s72
      %p78 = scmp.eq.s32.totalorder %s19, 0
      %p79 = por %p77, %p78
      %p80 = scmp.ne.s32.totalorder %s69, %s72
      %p81 = scmp.eq.s32.totalorder %s24, 1
      %p82 = por %p80, %p81
      %p83 = scmp.ne.s32.totalorder %s72, %s73
      %p84 = scmp.eq.s32.totalorder %s24, 0
      %p85 = por %p83, %p84
      %p86 = scmp.ne.s32.totalorder %s72, %s73
      %p87 = scmp.eq.s32.totalorder %s25, 1
      %p88 = por %p86, %p87
      %p90 = scmp.ne.s32.totalorder %s73, %s89
      %p91 = scmp.eq.s32.totalorder %s25, 0
      %p92 = por %p90, %p91
      %s94 = sadd.s32 %s93, 1
      %p97 = scmp.eq.s32.totalorder %s19, 1
      %p98 = scmp.ne.s32.totalorder %s93, %s95
      %p99 = scmp.eq.s32.totalorder %s19, 0
      %p100 = por %p98, %p99
      %p101 = scmp.ne.s32.totalorder %s93, %s95
      %p102 = scmp.eq.s32.totalorder %s24, 1
      %p103 = por %p101, %p102
      %p104 = scmp.ne.s32.totalorder %s95, %s96
      %p105 = scmp.eq.s32.totalorder %s24, 0
      %p106 = por %p104, %p105
      %p107 = scmp.ne.s32.totalorder %s95, %s96
      %p108 = scmp.eq.s32.totalorder %s25, 1
      %p109 = por %p107, %p108
      %p111 = scmp.ne.s32.totalorder %s96, %s110
      %p112 = scmp.eq.s32.totalorder %s25, 0
      %p113 = por %p111, %p112
      %s115 = sadd.s32 %s114, 1
      %p118 = scmp.eq.s32.totalorder %s19, 1
      %p119 = scmp.ne.s32.totalorder %s114, %s116
      %p120 = scmp.eq.s32.totalorder %s19, 0
      %p121 = por %p119, %p120
      %p122 = scmp.ne.s32.totalorder %s114, %s116
      %p123 = scmp.eq.s32.totalorder %s24, 1
      %p124 = por %p122, %p123
      %p125 = scmp.ne.s32.totalorder %s116, %s117
      %p126 = scmp.eq.s32.totalorder %s24, 0
      %p127 = por %p125, %p126
      %p128 = scmp.ne.s32.totalorder %s116, %s117
      %p129 = scmp.eq.s32.totalorder %s25, 1
      %p130 = por %p128, %p129
      %p132 = scmp.ne.s32.totalorder %s117, %s131
      %p133 = scmp.eq.s32.totalorder %s25, 0
      %p134 = por %p132, %p133
      %s135 = ssub.s32 %s26, %s38
      %s136 = ssub.s32 %s27, %s34
      %s137 = sor.u32 %s135, %s136
      %p138 = scmp.eq.s32.totalorder %s137, 0
      %s140 = sadd.s32 %s139, 1
      %s141 = scalar_select %p138, %s139, %s140
      %p144 = pneg %p138
      %p145 = scmp.eq.s32.totalorder %s19, 1
      %p146 = por %p144, %p145
      %p147 = scmp.ne.s32.totalorder %s139, %s142
      %p148 = scmp.eq.s32.totalorder %s19, 0
      %p149 = por %p147, %p148
      %p150 = scmp.ne.s32.totalorder %s139, %s142
      %p151 = scmp.eq.s32.totalorder %s24, 1
      %p152 = por %p150, %p151
      %p153 = scmp.ne.s32.totalorder %s142, %s143
      %p154 = scmp.eq.s32.totalorder %s24, 0
      %p155 = por %p153, %p154
      %p156 = scmp.ne.s32.totalorder %s142, %s143
      %p157 = scmp.eq.s32.totalorder %s25, 1
      %p158 = por %p156, %p157
      %p160 = scmp.ne.s32.totalorder %s143, %s159
      %p161 = scmp.eq.s32.totalorder %s25, 0
      %p162 = por %p160, %p161
      %p163 = scmp.le.s32.totalorder 1, %s19
      %p164 = scmp.lt.s32.totalorder %s19, 3
      %p165 = pnand %p163, %p164
      %p166 = pneg %p165
      // Predicated region
      $region9: #{tpu_custom_call.1} parent=5 // pred_check
        _
      $region10: #{tpu_custom_call.1} parent=5 // pred_check_branch
        %168 = sbr.rel (%p165) target = $region12
      $region11: #{tpu_custom_call.1} parent=5 // pred_region
        %s169 = ssub.s32 %s19, 1
        // Predicated region
        $region13: #{tpu_custom_call.1} parent=11 // pred_check
          %p170 = pneg %p106
        $region14: #{tpu_custom_call.1} parent=11 // pred_check_branch
          %172 = sbr.rel (%p170) target = $region16
        $region15: #{tpu_custom_call.1} parent=11 // pred_region
          %s174 = ssub.s32 256, 256
          %175 = vsyncadd [#allocation6], %s174
          %s176 = sshll.u32 [#allocation7], 4
          %s177 = int_to_ptr.vmem [resolvable:$true] %s176
          %182 = dma.hbm_to_vmem [thread:$0]  %s2, 256, %s177, [#allocation6], 64, 64, 4
        $region16: #{tpu_custom_call.1} parent=11 // pred_fallthru
          _
        // Predicated region
        $region17: #{tpu_custom_call.1} parent=11 // pred_check
          %p183 = pneg %p127
        $region18: #{tpu_custom_call.1} parent=11 // pred_check_branch
          %185 = sbr.rel (%p183) target = $region20
        $region19: #{tpu_custom_call.1} parent=11 // pred_region
          _
        $region20: #{tpu_custom_call.1} parent=11 // pred_fallthru
          _
      $region12: #{tpu_custom_call.1} parent=5 // pred_fallthru
        _
      %p186 = scmp.lt.s32.totalorder %s19, 2
      // Predicated region
      $region21: #{tpu_custom_call.1} parent=5 // pred_check
        %p187 = pneg %p186
      $region22: #{tpu_custom_call.1} parent=5 // pred_check_branch
        %189 = sbr.rel (%p187) target = $region24
      $region23: #{tpu_custom_call.1} parent=5 // pred_region
        // Predicated region
        $region25: #{tpu_custom_call.1} parent=23 // pred_check
          %p190 = pneg %p53
        $region26: #{tpu_custom_call.1} parent=23 // pred_check_branch
          %192 = sbr.rel (%p190) target = $region28
        $region27: #{tpu_custom_call.1} parent=23 // pred_region
          %s193 = sand.u32 %s43, 1
          %s194 = scalar_lea.sflag [#allocation3], %s193
          %s195 = sand.u32 %s43, 1
          %s196 = smul.addr %s195, 8
          %s197 = scalar_lea.vmem [#allocation2], %s196
          %s199 = ssub.s32 128, 128
          %200 = vsyncadd %s194, %s199
          %s201 = sadd.s32 %s27, %s26
          %s202 = smul.addr %s201, 128
          %s203 = scalar_lea.hbm %s0, %s202
          %s205 = sshll.u32 %s197, 4
          %s206 = int_to_ptr.vmem [resolvable:$true] %s205
          %208 = dma.hbm_to_vmem [thread:$0]  %s203, 128, %s206, %s194
        $region28: #{tpu_custom_call.1} parent=23 // pred_fallthru
          _
        // Predicated region
        $region29: #{tpu_custom_call.1} parent=23 // pred_check
          %p209 = pneg %p79
        $region30: #{tpu_custom_call.1} parent=23 // pred_check_branch
          %211 = sbr.rel (%p209) target = $region32
        $region31: #{tpu_custom_call.1} parent=23 // pred_region
          %s212 = sand.u32 %s19, 1
          %s213 = scalar_lea.sflag [#allocation6], %s212
          %s214 = sand.u32 %s69, 1
          %s215 = smul.addr %s214, 2
          %s216 = scalar_lea.vmem [#allocation5], %s215
          %s218 = ssub.s32 32, 32
          %219 = vsyncadd %s213, %s218
          %s220 = smul.addr %s26, 32
          %s221 = scalar_lea.hbm %s1, %s220
          %s223 = sshll.u32 %s216, 4
          %s224 = int_to_ptr.vmem [resolvable:$true] %s223
          %226 = dma.hbm_to_vmem [thread:$0]  %s221, 32, %s224, %s213
        $region32: #{tpu_custom_call.1} parent=23 // pred_fallthru
          _
      $region24: #{tpu_custom_call.1} parent=5 // pred_fallthru
        _
      %p227 = scmp.le.s32.totalorder 1, %s19
      %p228 = scmp.lt.s32.totalorder %s19, 3
      %p229 = pnand %p227, %p228
      %p230 = pneg %p229
      // Predicated region
      $region33: #{tpu_custom_call.1} parent=5 // pred_check
        _
      $region34: #{tpu_custom_call.1} parent=5 // pred_check_branch
        %232 = sbr.rel (%p229) target = $region36
      $region35: #{tpu_custom_call.1} parent=5 // pred_region
        %s233 = ssub.s32 %s19, 1
        %s234 = sand.u32 %s46, 1
        %s235 = scalar_lea.sflag [#allocation3], %s234
        %s236 = sand.u32 %s46, 1
        %s237 = smul.addr %s236, 8
        %s238 = scalar_lea.vmem [#allocation2], %s237
        // Predicated region
        $region37: #{tpu_custom_call.1} parent=35 // pred_check
          %p239 = pneg %p59
        $region38: #{tpu_custom_call.1} parent=35 // pred_check_branch
          %241 = sbr.rel (%p239) target = $region40
        $region39: #{tpu_custom_call.1} parent=35 // pred_region
          %242 = dma.done %s235, 128
        $region40: #{tpu_custom_call.1} parent=35 // pred_fallthru
          _
        %s243 = sand.u32 %s24, 1
        %s244 = scalar_lea.sflag [#allocation6], %s243
        %s245 = sand.u32 %s72, 1
        %s246 = smul.addr %s245, 2
        %s247 = scalar_lea.vmem [#allocation5], %s246
        // Predicated region
        $region41: #{tpu_custom_call.1} parent=35 // pred_check
          %p248 = pneg %p85
        $region42: #{tpu_custom_call.1} parent=35 // pred_check_branch
          %250 = sbr.rel (%p248) target = $region44
        $region43: #{tpu_custom_call.1} parent=35 // pred_region
          %251 = dma.done %s244, 32
        $region44: #{tpu_custom_call.1} parent=35 // pred_fallthru
          _
        // Predicated region
        $region45: #{tpu_custom_call.1} parent=35 // pred_check
          %p252 = pneg %p106
        $region46: #{tpu_custom_call.1} parent=35 // pred_check_branch
          %254 = sbr.rel (%p252) target = $region48
        $region47: #{tpu_custom_call.1} parent=35 // pred_region
          %255 = dma.done [#allocation6], 256
        $region48: #{tpu_custom_call.1} parent=35 // pred_fallthru
          _
        %s256 = sand.u32 %s46, 1
        %s257 = scalar_lea.sflag [#allocation3], %s256
        %s258 = sand.u32 %s46, 1
        %s259 = smul.addr %s258, 8
        %s260 = scalar_lea.vmem [#allocation2], %s259
        %p261 = pneg %p59
        %p262 = pneg %p56
        %s263 = sand.u32 %s24, 1
        %s264 = scalar_lea.sflag [#allocation6], %s263
        %s265 = sand.u32 %s72, 1
        %s266 = smul.addr %s265, 2
        %s267 = scalar_lea.vmem [#allocation5], %s266
        %p268 = pneg %p85
        %p269 = pneg %p82
        %p270 = pneg %p106
        %p271 = pneg %p103
        %p272 = pneg %p127
        %p273 = pneg %p124
        %p274 = pneg %p155
        %p275 = pneg %p152
        %s276 = sand.u32 %s142, 1
        %s277 = scalar_lea.sflag [#allocation4], %s276
        %s278 = sand.u32 %s142, 1
        %s279 = smul.addr %s278, 8
        %s280 = scalar_lea.vmem [#allocation8], %s279
        %v282 = vld [vmem:[%s238] sm:$0xff]
        %vm283 = vcmask 261120
        %v284 = vsel %vm283, %v282, 0.0
        %285 = vadd.xlane.f32.xlu0 %v284
        %v286 = vpop.xlane.xlu0 %285
        %v287 = vrcp.pop 32.0
        %v288 = vmul.f32 %v286, %v287
        %v289 = vmul.f32 %v282, %v282
        %v290 = vsel %vm283, %v289, 0.0
        %291 = vadd.xlane.f32.xlu0 %v290
        %v292 = vpop.xlane.xlu0 %291
        %v293 = vmul.f32 %v292, %v287
        %v294 = vmul.f32 %v288, %v288
        %v295 = vsub.f32 %v293, %v294
        %v296 = vmax.f32 %v295, 0.0
        %v297 = vsub.f32 %v282, %v288
        %v298 = vadd.f32 %v296, 1e-06
        %v299 = vrsqrt.pop %v298
        %v300 = vmul.f32 %v297, %v299
        %v301 = vld [vmem:[%s247] sm:$0x1]
        %v302 = vld [vmem:[%s247 + $0x1] sm:$0x1]
        %v303 = vlaneseq
        %v304 = vshrl.u32 %v303, 7
        %v305 = vsub.s32 0, %v304
        %v306 = vrot.slane %v302, %v305
        %v307 = vmul.f32 %v300, %v306
        %v308 = vlaneseq
        %v309 = vshrl.u32 %v308, 7
        %v310 = vsub.s32 0, %v309
        %v311 = vrot.slane %v301, %v310
        %v312 = vadd.f32 %v307, %v311
        %v313 = vpack.c.bf16 %v312, %v312
        %v314 = vld [vmem:[#allocation7] sm:$0xf]
        %v315 = vld [vmem:[#allocation7 + $0x4] sm:$0xf]
        %v316 = vld [vmem:[#allocation7 + $0x8] sm:$0xf]
        %v317 = vld [vmem:[#allocation7 + $0xc] sm:$0xf]
        %v318 = vld [vmem:[%s3] sm:$0x1]
        %v320 = vlaneseq
        %v321 = vshrl.u32 %v320, 7
        %v322 = vsub.s32 0, %v321
        %v323 = vrot.slane %v318, %v322
        %v329 = vunpack.c.l.b16 %v314
        %v330 = vunpack.c.l.b16 %v315
        %v331 = vunpack.c.l.b16 %v316
        %v332 = vunpack.c.l.b16 %v317
        %v333 = vpack.c.b16 %v330, %v329
        %v334 = vpack.c.b16 %v332, %v331
        %v338 = vsel %vm283, %v313, 0
        %340 = vmatprep.subr.bf16.mxu0 0
        %341 = vmatpush1.bf16.msra.mxu0 %v333
        %342 = vmatprep.subr.bf16.mxu0 0
        %343 = vmatpush1.bf16.msra.mxu0 %v334
        %344 = vmatprep.subr.bf16.mxu0 0
        %345 = vmatpush1.bf16.msra.mxu0 0
        %346 = vmatprep.subr.bf16.mxu0 0
        %347 = vmatpush1.bf16.msra.mxu0 0
        %348 = vmatprep.subr.bf16.mxu0 0
        %349 = vmatpush1.bf16.msra.mxu0 0
        %350 = vmatprep.subr.bf16.mxu0 0
        %351 = vmatpush1.bf16.msra.mxu0 0
        %352 = vmatprep.subr.bf16.mxu0 0
        %353 = vmatpush1.bf16.msra.mxu0 0
        %354 = vmatprep.subr.bf16.mxu0 0
        %355 = vmatpush1.bf16.msra.mxu0 0
        %356 = vmatprep.subr.bf16.mxu0 0
        %357 = vmatpush1.bf16.msra.mxu0 0
        %358 = vmatprep.subr.bf16.mxu0 0
        %359 = vmatpush1.bf16.msra.mxu0 0
        %360 = vmatprep.subr.bf16.mxu0 0
        %361 = vmatpush1.bf16.msra.mxu0 0
        %362 = vmatprep.subr.bf16.mxu0 0
        %363 = vmatpush1.bf16.msra.mxu0 0
        %364 = vmatprep.subr.bf16.mxu0 0
        %365 = vmatpush1.bf16.msra.mxu0 0
        %366 = vmatprep.subr.bf16.mxu0 0
        %367 = vmatpush1.bf16.msra.mxu0 0
        %368 = vmatprep.subr.bf16.mxu0 0
        %369 = vmatpush1.bf16.msra.mxu0 0
        %370 = vmatprep.subr.bf16.mxu0 0
        %371 = vmatpush1.bf16.msra.mxu0 0
        %372 = vmatprep.mubr.bf16.mxu0 0
        %373 = vmatmul.mubr.bf16.gmra.mrb[0].mxu0 %v338
        %v374 = vpop.f32.mrb[0].mxu0
        %v375 = vadd.f32 %v323, %v374
        %v376 = vpop.f32.mrb[0].mxu0
        %v377 = vpop.f32.mrb[0].mxu0
        %v378 = vpop.f32.mrb[0].mxu0
        %379 = vdwg.mxu0
        %380 = vst [vmem:[%s280] sm:$0xff] %v375
        %s381 = sand.u32 %s142, 1
        %s382 = scalar_lea.sflag [#allocation4], %s381
        %s383 = sand.u32 %s142, 1
        %s384 = smul.addr %s383, 8
        %s385 = scalar_lea.vmem [#allocation8], %s384
        // Predicated region
        $region49: #{tpu_custom_call.1} parent=35 // pred_check
          %p386 = pneg %p152
        $region50: #{tpu_custom_call.1} parent=35 // pred_check_branch
          %388 = sbr.rel (%p386) target = $region52
        $region51: #{tpu_custom_call.1} parent=35 // pred_region
          %s390 = ssub.s32 128, 128
          %391 = vsyncadd %s382, %s390
          %s392 = sadd.s32 %s29, %s28
          %s393 = smul.addr %s392, 128
          %s394 = scalar_lea.hbm %s4, %s393
          %s396 = sshll.u32 %s385, 4
          %s397 = int_to_ptr.vmem [resolvable:$true] %s396
          %399 = dma.vmem_to_hbm [thread:$0]  %s397, 128, %s394, %s382
        $region52: #{tpu_custom_call.1} parent=35 // pred_fallthru
          _
      $region36: #{tpu_custom_call.1} parent=5 // pred_fallthru
        _
      %p400 = scmp.le.s32.totalorder 2, %s19
      // Predicated region
      $region53: #{tpu_custom_call.1} parent=5 // pred_check
        %p401 = pneg %p400
      $region54: #{tpu_custom_call.1} parent=5 // pred_check_branch
        %403 = sbr.rel (%p401) target = $region56
      $region55: #{tpu_custom_call.1} parent=5 // pred_region
        %s404 = ssub.s32 %s19, 2
        // Predicated region
        $region57: #{tpu_custom_call.1} parent=55 // pred_check
          %p405 = pneg %p158
        $region58: #{tpu_custom_call.1} parent=55 // pred_check_branch
          %407 = sbr.rel (%p405) target = $region60
        $region59: #{tpu_custom_call.1} parent=55 // pred_region
          %s408 = sand.u32 %s143, 1
          %s409 = scalar_lea.sflag [#allocation4], %s408
          %s410 = sand.u32 %s143, 1
          %s411 = smul.addr %s410, 8
          %s412 = scalar_lea.vmem [#allocation8], %s411
          %413 = dma.done %s409, 128
        $region60: #{tpu_custom_call.1} parent=55 // pred_fallthru
          _
      $region56: #{tpu_custom_call.1} parent=5 // pred_fallthru
        _
    $region6: #{tpu_custom_call.1} parent=1 // loop_footer
      %s23 = sadd.s32 1, %s19
    $region7: #{tpu_custom_call.1} parent=1 // loop_footer_branch
      %18 = sbr.rel target = $region3
    $region8: #{tpu_custom_call.1} parent=1 // loop_exit
      _
    %414 = vsyncpa [#allocation3], 1
    %s415 = scalar_lea.sflag [#allocation3], 1
    %416 = vsyncpa %s415, 1
    %417 = vsyncpa [#allocation6], 1
    %s418 = scalar_lea.sflag [#allocation6], 1
    %419 = vsyncpa %s418, 1
    %420 = vsyncpa [#allocation4], 1
    %s421 = scalar_lea.sflag [#allocation4], 1
    %422 = vsyncpa %s421, 1

</llo_original>
